<compile_context>
chip_gen: v6e
topology: v6e:2x2x1
jax: 0.10.0
libtpu: 0.0.40
codegen_flags: <defaults>
</compile_context>

<pallas_src>
import jax
import jax.numpy as jnp
from jax.experimental import pallas as pl
from jax.experimental.pallas import tpu as pltpu


def _round_up(x, m):
    return ((x + m - 1) // m) * m


def _pick_row_tile(rows, sublane, max_tile):
    """Row tile: >=2 grid steps when possible (megacore), minimal padding."""
    max_tile = max(sublane, _round_up(max_tile, sublane))
    steps = max(2, pl.cdiv(rows, max_tile))
    tile = _round_up(pl.cdiv(rows, steps), sublane)
    if tile >= rows:                      # too few rows to split usefully
        tile = _round_up(rows, sublane)
    return tile


def _make_fused_kernel(n_emb, d_outs, d_out_pad, compute_dtype):
    """Kernel: per-embedder bf16 MXU dot -> f32 epilogue (bias + scale) -> store."""
    d_out_tot = sum(d_outs)

    def kernel(*refs):
        x_refs = refs[:n_emb]
        w_refs = refs[n_emb:2 * n_emb]
        b_ref = refs[2 * n_emb]          # (1, d_out_pad) f32 raw bias (zero in pad)
        s_ref = refs[2 * n_emb + 1]      # (1, d_out_pad) f32 scale (0 if forced zero)
        o_ref = refs[2 * n_emb + 2]      # (row_tile, d_out_pad)

        c0 = 0
        for k in range(n_emb):
            dk = d_outs[k]
            xk = x_refs[k][...].astype(compute_dtype)     # in-kernel cast (VPU slack)
            part = jnp.dot(xk, w_refs[k][...],
                           preferred_element_type=jnp.float32)
            bk = b_ref[:, c0:c0 + dk]
            sk = s_ref[:, c0:c0 + dk]
            # (x @ W + b) * scale_factor**(N-k), exact in f32
            o_ref[:, c0:c0 + dk] = ((part + bk) * sk).astype(o_ref.dtype)
            c0 += dk
        if d_out_pad != d_out_tot:
            o_ref[:, d_out_tot:] = jnp.zeros(
                (o_ref.shape[0], d_out_pad - d_out_tot), o_ref.dtype)

    return kernel


def latent_conditioner_forward(batch, params, *, scale_factor=1.0,
                               force_zero_embeddings=None,
                               compute_dtype=jnp.bfloat16,   # MXU-native everywhere
                               out_dtype=jnp.float32,        # bf16 if consumer allows
                               max_row_tile=512):
    """Fused LatentConditioner.forward producing {'crossattn': [B, S, sum(d_out)]}."""
    if force_zero_embeddings is None:
        force_zero_embeddings = []
    n_emb = len(params)

    keys = [p[0] for p in params]
    xs = [batch[k] for k in keys]
    B, S = xs[0].shape[0], xs[0].shape[1]
    d_ins = [int(x.shape[-1]) for x in xs]
    d_outs = [int(w.shape[1]) for (_, w, _) in params]
    d_out_tot = sum(d_outs)
    d_out_pad = _round_up(d_out_tot, 128)

    # ---- host-side prep: tiny vectors + weight casts (cacheable by the caller
    #      per parameter set / scale / force-zero config).
    ws = [w.astype(compute_dtype) for (_, w, _) in params]
    b_vec = jnp.zeros((1, d_out_pad), jnp.float32)
    s_vec = jnp.zeros((1, d_out_pad), jnp.float32)
    c0 = 0
    for k, (key_k, _, b) in enumerate(params):
        # PyTorch scales the running concat once per embedder -> s**(N-k)
        eff = 0.0 if key_k in force_zero_embeddings \
            else float(scale_factor) ** (n_emb - k)
        b_vec = b_vec.at[0, c0:c0 + d_outs[k]].set(b.astype(jnp.float32))
        s_vec = s_vec.at[0, c0:c0 + d_outs[k]].set(eff)
        c0 += d_outs[k]

    # ---- row tiling
    rows = B * S
    sublane = 16 if any(jnp.dtype(x.dtype).itemsize == 2 for x in xs) else 8
    row_tile = _pick_row_tile(rows, sublane, max_row_tile)
    rows_p = _round_up(rows, row_tile)

    xs_flat = [x.reshape(rows, d) for x, d in zip(xs, d_ins)]
    if rows_p != rows:
        xs_flat = [jnp.pad(x, ((0, rows_p - rows), (0, 0))) for x in xs_flat]

    grid = (rows_p // row_tile,)

    in_specs = (
        [pl.BlockSpec((row_tile, d), lambda i: (i, 0)) for d in d_ins] +      # x_k tiles
        [pl.BlockSpec((di, do), lambda i: (0, 0))                             # W_k resident
         for di, do in zip(d_ins, d_outs)] +
        [pl.BlockSpec((1, d_out_pad), lambda i: (0, 0)),                      # bias resident
         pl.BlockSpec((1, d_out_pad), lambda i: (0, 0))]                      # scale resident
    )
    out_spec = pl.BlockSpec((row_tile, d_out_pad), lambda i: (i, 0))

    # ---- explicit VMEM budget: 2x (double-buffered) tiles + resident W/vecs, +25%
    isz = lambda dt: jnp.dtype(dt).itemsize
    x_tile_b = sum(row_tile * d * isz(x.dtype) for d, x in zip(d_ins, xs_flat))
    w_b = sum(di * do for di, do in zip(d_ins, d_outs)) * isz(compute_dtype)
    o_tile_b = row_tile * d_out_pad * isz(out_dtype)
    vec_b = 2 * d_out_pad * 4
    need = 2 * (x_tile_b + o_tile_b + w_b + vec_b)
    vmem_limit = int(min(max(need * 5 // 4, 4 << 20), 128 << 20))

    kernel = _make_fused_kernel(n_emb, d_outs, d_out_pad, compute_dtype)

    out = pl.pallas_call(
        kernel,
        out_shape=jax.ShapeDtypeStruct((rows_p, d_out_pad), out_dtype),
        grid_spec=pl.GridSpec(grid=grid, in_specs=in_specs, out_specs=out_spec),
        compiler_params=pltpu.CompilerParams(
            dimension_semantics=("parallel",),
            vmem_limit_bytes=vmem_limit),
    )(*xs_flat, *ws, b_vec, s_vec)

    # slice only if padding actually exists (avoids an extra HBM pass otherwise)
    if rows_p != rows or d_out_pad != d_out_tot:
        out = out[:rows, :d_out_tot]
    return {"crossattn": out.reshape(B, S, d_out_tot)}


# ----------------------------------------------------------------------------
# Pure-JAX reference (mirrors the PyTorch forward exactly, including the
# per-embedder compounding of scale_factor on the running concatenation)
# ----------------------------------------------------------------------------
def latent_conditioner_reference(batch, params, *, scale_factor=1.0,
                                 force_zero_embeddings=None):
    if force_zero_embeddings is None:
        force_zero_embeddings = []
    output = {}
    for key, w, b in params:
        emb = batch[key] @ w + b
        # ucg_rate == 0.0  =>  bernoulli((1-0)*ones) == ones  =>  no-op
        if key in force_zero_embeddings:
            emb = jnp.zeros_like(emb)
        if "crossattn" in output:
            output["crossattn"] = jnp.concatenate((output["crossattn"], emb), axis=2)
        else:
            output["crossattn"] = emb
        output["crossattn"] = output["crossattn"] * scale_factor
    return output


if __name__ == "__main__":
    B, S = 2, 8
    D1_IN, D1_OUT = 32, 64
    D2_IN, D2_OUT = 16, 64
    SCALE = 0.5   # power of two -> exact scaling

    key = jax.random.PRNGKey(0)
    k_x1, k_x2, k_w1, k_b1, k_w2, k_b2 = jax.random.split(key, 6)

    batch = {
        "txt": jax.random.normal(k_x1, (B, S, D1_IN), dtype=jnp.float32),
        "vec": jax.random.normal(k_x2, (B, S, D2_IN), dtype=jnp.float32),
    }
    params = [
        ("txt",
         jax.random.normal(k_w1, (D1_IN, D1_OUT), dtype=jnp.float32) * 0.02,
         jax.random.normal(k_b1, (D1_OUT,), dtype=jnp.float32) * 0.02),
        ("vec",
         jax.random.normal(k_w2, (D2_IN, D2_OUT), dtype=jnp.float32) * 0.02,
         jax.random.normal(k_b2, (D2_OUT,), dtype=jnp.float32) * 0.02),
    ]

    ref = latent_conditioner_reference(batch, params, scale_factor=SCALE)

    # Default (bf16 MXU inputs, f32 accumulate/epilogue) — loose tolerance.
    out = latent_conditioner_forward(batch, params, scale_factor=SCALE)
    jax.block_until_ready(out["crossattn"])
    assert out["crossattn"].shape == (B, S, D1_OUT + D2_OUT)
    assert jnp.allclose(out["crossattn"], ref["crossattn"], atol=1e-2, rtol=5e-2), (
        float(jnp.max(jnp.abs(out["crossattn"] - ref["crossattn"]))))

    # f32 compute path — tight check.
    out_f32 = latent_conditioner_forward(batch, params, scale_factor=SCALE,
                                         compute_dtype=jnp.float32)
    jax.block_until_ready(out_f32["crossattn"])
    assert jnp.allclose(out_f32["crossattn"], ref["crossattn"], atol=2e-3, rtol=2e-2), (
        float(jnp.max(jnp.abs(out_f32["crossattn"] - ref["crossattn"]))))

    # force_zero_embeddings path (applied via the f32 per-column scale vector)
    out_z = latent_conditioner_forward(batch, params, scale_factor=SCALE,
                                       force_zero_embeddings=["vec"])
    ref_z = latent_conditioner_reference(batch, params, scale_factor=SCALE,
                                         force_zero_embeddings=["vec"])
    jax.block_until_ready(out_z["crossattn"])
    assert jnp.allclose(out_z["crossattn"], ref_z["crossattn"], atol=1e-2, rtol=5e-2)
    # zeroed half must be exactly zero
    assert jnp.all(out_z["crossattn"][..., D1_OUT:] == 0.0)

    print("KERNEL_OK")
</pallas_src>

<mosaic_0001>
module attributes {stable_mosaic.version = 11 : i64} {
  func.func @kernel(%arg0: i32, %arg1: memref<8x32xf32, #tpu.memory_space<vmem>>, %arg2: memref<8x16xf32, #tpu.memory_space<vmem>>, %arg3: memref<32x64xbf16, #tpu.memory_space<vmem>>, %arg4: memref<16x64xbf16, #tpu.memory_space<vmem>>, %arg5: memref<1x128xf32, #tpu.memory_space<vmem>>, %arg6: memref<1x128xf32, #tpu.memory_space<vmem>>, %arg7: memref<8x128xf32, #tpu.memory_space<vmem>>) attributes {dimension_semantics = [#tpu.dimension_semantics<parallel>], iteration_bounds = array<i64: 2>, scalar_prefetch = 0 : i64, scratch_operands = 0 : i64, tpu.core_type = #tpu.core_type<tc>, window_params = [{transform_indices = @transform_0, window_bounds = array<i64: 8, 32>}, {transform_indices = @transform_1, window_bounds = array<i64: 8, 16>}, {pipeline_mode = #tpu.pipeline_mode<synchronous>, transform_indices = @transform_2, window_bounds = array<i64: 32, 64>}, {pipeline_mode = #tpu.pipeline_mode<synchronous>, transform_indices = @transform_3, window_bounds = array<i64: 16, 64>}, {pipeline_mode = #tpu.pipeline_mode<synchronous>, transform_indices = @transform_4, window_bounds = array<i64: 1, 128>}, {pipeline_mode = #tpu.pipeline_mode<synchronous>, transform_indices = @transform_5, window_bounds = array<i64: 1, 128>}, {transform_indices = @transform_6, window_bounds = array<i64: 8, 128>}]} {
    %c0 = arith.constant 0 : index
    %c0_0 = arith.constant 0 : index
    %0 = vector.load %arg1[%c0, %c0_0] : memref<8x32xf32, #tpu.memory_space<vmem>>, vector<8x32xf32>
    %1 = arith.truncf %0 : vector<8x32xf32> to vector<8x32xbf16>
    %c0_1 = arith.constant 0 : index
    %c0_2 = arith.constant 0 : index
    %2 = vector.load %arg3[%c0_1, %c0_2] : memref<32x64xbf16, #tpu.memory_space<vmem>>, vector<32x64xbf16>
    %cst = arith.constant dense<0.000000e+00> : vector<8x64xf32>
    %3 = tpu.matmul %1, %2, %cst {dimension_numbers = #tpu.dot_dimension_numbers<[1], [0], [0], [1], [0, 0, 1, 1], [], []>} : vector<8x32xbf16>, vector<32x64xbf16>, vector<8x64xf32> -> vector<8x64xf32>
    %c0_3 = arith.constant 0 : index
    %c0_4 = arith.constant 0 : index
    %4 = vector.load %arg5[%c0_3, %c0_4] : memref<1x128xf32, #tpu.memory_space<vmem>>, vector<1x64xf32>
    %c0_5 = arith.constant 0 : index
    %c0_6 = arith.constant 0 : index
    %5 = vector.load %arg6[%c0_5, %c0_6] : memref<1x128xf32, #tpu.memory_space<vmem>>, vector<1x64xf32>
    %6 = vector.broadcast %4 : vector<1x64xf32> to vector<8x64xf32>
    %7 = arith.addf %3, %6 : vector<8x64xf32>
    %8 = vector.broadcast %5 : vector<1x64xf32> to vector<8x64xf32>
    %9 = arith.mulf %7, %8 : vector<8x64xf32>
    %c0_7 = arith.constant 0 : index
    %c0_8 = arith.constant 0 : index
    %10 = vector.load %arg7[%c0_7, %c0_8] : memref<8x128xf32, #tpu.memory_space<vmem>>, vector<8x64xf32>
    tpu.vector_store %arg7[%c0_7, %c0_8], %9 {strides = array<i32>} : memref<8x128xf32, #tpu.memory_space<vmem>>, vector<8x64xf32>,
    %c0_9 = arith.constant 0 : index
    %c0_10 = arith.constant 0 : index
    %11 = vector.load %arg2[%c0_9, %c0_10] : memref<8x16xf32, #tpu.memory_space<vmem>>, vector<8x16xf32>
    %12 = arith.truncf %11 : vector<8x16xf32> to vector<8x16xbf16>
    %c0_11 = arith.constant 0 : index
    %c0_12 = arith.constant 0 : index
    %13 = vector.load %arg4[%c0_11, %c0_12] : memref<16x64xbf16, #tpu.memory_space<vmem>>, vector<16x64xbf16>
    %cst_13 = arith.constant dense<0.000000e+00> : vector<8x64xf32>
    %14 = tpu.matmul %12, %13, %cst_13 {dimension_numbers = #tpu.dot_dimension_numbers<[1], [0], [0], [1], [0, 0, 1, 1], [], []>} : vector<8x16xbf16>, vector<16x64xbf16>, vector<8x64xf32> -> vector<8x64xf32>
    %c0_14 = arith.constant 0 : index
    %c64 = arith.constant 64 : index
    %15 = vector.load %arg5[%c0_14, %c64] : memref<1x128xf32, #tpu.memory_space<vmem>>, vector<1x64xf32>
    %c0_15 = arith.constant 0 : index
    %c64_16 = arith.constant 64 : index
    %16 = vector.load %arg6[%c0_15, %c64_16] : memref<1x128xf32, #tpu.memory_space<vmem>>, vector<1x64xf32>
    %17 = vector.broadcast %15 : vector<1x64xf32> to vector<8x64xf32>
    %18 = arith.addf %14, %17 : vector<8x64xf32>
    %19 = vector.broadcast %16 : vector<1x64xf32> to vector<8x64xf32>
    %20 = arith.mulf %18, %19 : vector<8x64xf32>
    %c0_17 = arith.constant 0 : index
    %c64_18 = arith.constant 64 : index
    %21 = vector.load %arg7[%c0_17, %c64_18] : memref<8x128xf32, #tpu.memory_space<vmem>>, vector<8x64xf32>
    tpu.vector_store %arg7[%c0_17, %c64_18], %20 {strides = array<i32>} : memref<8x128xf32, #tpu.memory_space<vmem>>, vector<8x64xf32>,
    return
  }
  func.func @transform_0(%arg0: i32) -> (i32, i32) {
    %c0_i32 = arith.constant 0 : i32
    %c0_i32_0 = arith.constant 0 : i32
    return %arg0, %c0_i32 : i32, i32
  }
  func.func @transform_1(%arg0: i32) -> (i32, i32) {
    %c0_i32 = arith.constant 0 : i32
    %c0_i32_0 = arith.constant 0 : i32
    return %arg0, %c0_i32 : i32, i32
  }
  func.func @transform_2(%arg0: i32) -> (i32, i32) {
    %c0_i32 = arith.constant 0 : i32
    %c0_i32_0 = arith.constant 0 : i32
    %c0_i32_1 = arith.constant 0 : i32
    return %c0_i32, %c0_i32_0 : i32, i32
  }
  func.func @transform_3(%arg0: i32) -> (i32, i32) {
    %c0_i32 = arith.constant 0 : i32
    %c0_i32_0 = arith.constant 0 : i32
    %c0_i32_1 = arith.constant 0 : i32
    return %c0_i32, %c0_i32_0 : i32, i32
  }
  func.func @transform_4(%arg0: i32) -> (i32, i32) {
    %c0_i32 = arith.constant 0 : i32
    %c0_i32_0 = arith.constant 0 : i32
    %c0_i32_1 = arith.constant 0 : i32
    return %c0_i32, %c0_i32_0 : i32, i32
  }
  func.func @transform_5(%arg0: i32) -> (i32, i32) {
    %c0_i32 = arith.constant 0 : i32
    %c0_i32_0 = arith.constant 0 : i32
    %c0_i32_1 = arith.constant 0 : i32
    return %c0_i32, %c0_i32_0 : i32, i32
  }
  func.func @transform_6(%arg0: i32) -> (i32, i32) {
    %c0_i32 = arith.constant 0 : i32
    %c0_i32_0 = arith.constant 0 : i32
    return %arg0, %c0_i32 : i32, i32
  }
}

</mosaic_0001>

<llo_original>
// kernel: tpu_custom_call.1
$region0: #{tpu_custom_call.1}
  #allocation0 [shape = 'u32[]', space=smem, size = 0x4, offset = 0x4, fixed_abs, tag = 'smem constant byte address 0x4 - core index']
  #allocation1 [shape = 'u32[144,128]{1,0:T(1,128)}', space=vmem, size = 0x12000, scoped, tag = 'internal scratch']
  %s0 = inlined_call_operand.hbm [shape: f32[16,32], index: 0, kind: input, shape index: {}]
  %s1 = inlined_call_operand.hbm [shape: f32[16,16], index: 1, kind: input, shape index: {}]
  %s2 = inlined_call_operand.hbm [shape: bf16[32,64], index: 2, kind: input, shape index: {}]
  %s3 = inlined_call_operand.hbm [shape: bf16[16,64], index: 3, kind: input, shape index: {}]
  %s4 = inlined_call_operand.vmem [shape: f32[1,128], index: 4, kind: input, shape index: {}]
  %s5 = inlined_call_operand.vmem [shape: f32[1,128], index: 5, kind: input, shape index: {}]
  %s6 = inlined_call_operand.hbm [shape: f32[16,128], index: 6, kind: output, shape index: {}]
  %s7 = sld [smem:[#allocation0]]
  $region73: #{tpu_custom_call.1} parent=0
    _
  %s9 = ssub.s32 1, %s7
  %s10 = scalar_select 0, %s9, %s7
  $region1: #{tpu_custom_call.1} parent=0
    #allocation2 [shape = 'u8[8192]{0}', space=vmem, size = 0x2000, scoped, tag = 'input window, operand 0']
    #allocation3 [shape = 's32[2]{0}', space=sflag, size = 0x8, scoped, tag = 'scoped memory for tpu_custom_call.1']
    #allocation4 [shape = 's32[2]{0}', space=sflag, size = 0x8, scoped, tag = 'scoped memory for tpu_custom_call.1']
    #allocation5 [shape = 'u8[8192]{0}', space=vmem, size = 0x2000, scoped, tag = 'input window, operand 1']
    #allocation6 [shape = 's32[2]{0}', space=sflag, size = 0x8, scoped, tag = 'scoped memory for tpu_custom_call.1']
    #allocation7 [shape = 'u8[8192]{0}', space=vmem, size = 0x2000, scoped, tag = 'input window, operand 2, single buffered']
    #allocation8 [shape = 'u8[4096]{0}', space=vmem, size = 0x1000, scoped, tag = 'input window, operand 3, single buffered']
    #allocation9 [shape = 's32[1]{0}', space=sflag, size = 0x4, scoped, tag = 'scoped memory for tpu_custom_call.1']
    #allocation10 [shape = 'u8[8192]{0}', space=vmem, size = 0x2000, scoped, tag = 'output window, operand 0']
    %11 = vsyncpa [#allocation3], 0
    %s12 = scalar_lea.sflag [#allocation3], 1
    %13 = vsyncpa %s12, 0
    %14 = vsyncpa [#allocation6], 0
    %s15 = scalar_lea.sflag [#allocation6], 1
    %16 = vsyncpa %s15, 0
    %17 = vsyncpa [#allocation9], 0
    %18 = vsyncpa [#allocation4], 0
    %s19 = scalar_lea.sflag [#allocation4], 1
    %20 = vsyncpa %s19, 0
    loop: start=0, step=1, limit=4
    $region2: #{tpu_custom_call.1} parent=1 // loop_pre_header
      _
    $region3: #{tpu_custom_call.1} parent=1 // loop_header
      %s22 = sphi 0, %s26
      %p23 = scmp.ge.s32.totalorder %s22, 4
      %s32 = sphi 0, %s34
      %s35 = sphi 0, %s32
      %s36 = sphi 0, %s35
      %s52 = sphi 0, %s36
      %s58 = sphi 0, %s60
      %s61 = sphi 0, %s58
      %s62 = sphi 0, %s61
      %s78 = sphi 0, %s62
      %s82 = sphi 0, %s82
      %s84 = sphi 0, %s82
      %s85 = sphi 0, %s84
      %s99 = sphi 0, %s85
      %s103 = sphi 0, %s103
      %s105 = sphi 0, %s103
      %s106 = sphi 0, %s105
      %s120 = sphi 0, %s106
      %s124 = sphi 0, %s124
      %s126 = sphi 0, %s124
      %s127 = sphi 0, %s126
      %s141 = sphi 0, %s127
      %s145 = sphi 0, %s145
      %s147 = sphi 0, %s145
      %s148 = sphi 0, %s147
      %s162 = sphi 0, %s148
      %s168 = sphi 0, %s170
      %s171 = sphi 0, %s168
      %s172 = sphi 0, %s171
      %s188 = sphi 0, %s172
    $region4: #{tpu_custom_call.1} parent=1 // loop_header_branch
      %25 = sbr.rel (%p23) target = $region8
    $region5: #{tpu_custom_call.1} parent=1 // loop_body
      %s27 = ssub.s32 %s22, 1
      %s28 = ssub.s32 %s22, 2
      %s29 = sadd.s32 %s22, 1
      %s30 = ssub.s32 %s22, %s29
      %p31 = scmp.eq.s32.totalorder %s30, 0
      %s33 = sadd.s32 %s32, 1
      %s34 = scalar_select %p31, %s32, %s33
      %p37 = pneg %p31
      %p38 = scmp.eq.s32.totalorder %s22, 1
      %p39 = por %p37, %p38
      %p40 = scmp.ne.s32.totalorder %s32, %s35
      %p41 = scmp.eq.s32.totalorder %s22, 0
      %p42 = por %p40, %p41
      %p43 = scmp.ne.s32.totalorder %s32, %s35
      %p44 = scmp.eq.s32.totalorder %s27, 1
      %p45 = por %p43, %p44
      %p46 = scmp.ne.s32.totalorder %s35, %s36
      %p47 = scmp.eq.s32.totalorder %s27, 0
      %p48 = por %p46, %p47
      %p49 = scmp.ne.s32.totalorder %s35, %s36
      %p50 = scmp.eq.s32.totalorder %s28, 1
      %p51 = por %p49, %p50
      %p53 = scmp.ne.s32.totalorder %s36, %s52
      %p54 = scmp.eq.s32.totalorder %s28, 0
      %p55 = por %p53, %p54
      %s56 = ssub.s32 %s22, %s29
      %p57 = scmp.eq.s32.totalorder %s56, 0
      %s59 = sadd.s32 %s58, 1
      %s60 = scalar_select %p57, %s58, %s59
      %p63 = pneg %p57
      %p64 = scmp.eq.s32.totalorder %s22, 1
      %p65 = por %p63, %p64
      %p66 = scmp.ne.s32.totalorder %s58, %s61
      %p67 = scmp.eq.s32.totalorder %s22, 0
      %p68 = por %p66, %p67
      %p69 = scmp.ne.s32.totalorder %s58, %s61
      %p70 = scmp.eq.s32.totalorder %s27, 1
      %p71 = por %p69, %p70
      %p72 = scmp.ne.s32.totalorder %s61, %s62
      %p73 = scmp.eq.s32.totalorder %s27, 0
      %p74 = por %p72, %p73
      %p75 = scmp.ne.s32.totalorder %s61, %s62
      %p76 = scmp.eq.s32.totalorder %s28, 1
      %p77 = por %p75, %p76
      %p79 = scmp.ne.s32.totalorder %s62, %s78
      %p80 = scmp.eq.s32.totalorder %s28, 0
      %p81 = por %p79, %p80
      %s83 = sadd.s32 %s82, 1
      %p86 = scmp.eq.s32.totalorder %s22, 1
      %p87 = scmp.ne.s32.totalorder %s82, %s84
      %p88 = scmp.eq.s32.totalorder %s22, 0
      %p89 = por %p87, %p88
      %p90 = scmp.ne.s32.totalorder %s82, %s84
      %p91 = scmp.eq.s32.totalorder %s27, 1
      %p92 = por %p90, %p91
      %p93 = scmp.ne.s32.totalorder %s84, %s85
      %p94 = scmp.eq.s32.totalorder %s27, 0
      %p95 = por %p93, %p94
      %p96 = scmp.ne.s32.totalorder %s84, %s85
      %p97 = scmp.eq.s32.totalorder %s28, 1
      %p98 = por %p96, %p97
      %p100 = scmp.ne.s32.totalorder %s85, %s99
      %p101 = scmp.eq.s32.totalorder %s28, 0
      %p102 = por %p100, %p101
      %s104 = sadd.s32 %s103, 1
      %p107 = scmp.eq.s32.totalorder %s22, 1
      %p108 = scmp.ne.s32.totalorder %s103, %s105
      %p109 = scmp.eq.s32.totalorder %s22, 0
      %p110 = por %p108, %p109
      %p111 = scmp.ne.s32.totalorder %s103, %s105
      %p112 = scmp.eq.s32.totalorder %s27, 1
      %p113 = por %p111, %p112
      %p114 = scmp.ne.s32.totalorder %s105, %s106
      %p115 = scmp.eq.s32.totalorder %s27, 0
      %p116 = por %p114, %p115
      %p117 = scmp.ne.s32.totalorder %s105, %s106
      %p118 = scmp.eq.s32.totalorder %s28, 1
      %p119 = por %p117, %p118
      %p121 = scmp.ne.s32.totalorder %s106, %s120
      %p122 = scmp.eq.s32.totalorder %s28, 0
      %p123 = por %p121, %p122
      %s125 = sadd.s32 %s124, 1
      %p128 = scmp.eq.s32.totalorder %s22, 1
      %p129 = scmp.ne.s32.totalorder %s124, %s126
      %p130 = scmp.eq.s32.totalorder %s22, 0
      %p131 = por %p129, %p130
      %p132 = scmp.ne.s32.totalorder %s124, %s126
      %p133 = scmp.eq.s32.totalorder %s27, 1
      %p134 = por %p132, %p133
      %p135 = scmp.ne.s32.totalorder %s126, %s127
      %p136 = scmp.eq.s32.totalorder %s27, 0
      %p137 = por %p135, %p136
      %p138 = scmp.ne.s32.totalorder %s126, %s127
      %p139 = scmp.eq.s32.totalorder %s28, 1
      %p140 = por %p138, %p139
      %p142 = scmp.ne.s32.totalorder %s127, %s141
      %p143 = scmp.eq.s32.totalorder %s28, 0
      %p144 = por %p142, %p143
      %s146 = sadd.s32 %s145, 1
      %p149 = scmp.eq.s32.totalorder %s22, 1
      %p150 = scmp.ne.s32.totalorder %s145, %s147
      %p151 = scmp.eq.s32.totalorder %s22, 0
      %p152 = por %p150, %p151
      %p153 = scmp.ne.s32.totalorder %s145, %s147
      %p154 = scmp.eq.s32.totalorder %s27, 1
      %p155 = por %p153, %p154
      %p156 = scmp.ne.s32.totalorder %s147, %s148
      %p157 = scmp.eq.s32.totalorder %s27, 0
      %p158 = por %p156, %p157
      %p159 = scmp.ne.s32.totalorder %s147, %s148
      %p160 = scmp.eq.s32.totalorder %s28, 1
      %p161 = por %p159, %p160
      %p163 = scmp.ne.s32.totalorder %s148, %s162
      %p164 = scmp.eq.s32.totalorder %s28, 0
      %p165 = por %p163, %p164
      %s166 = ssub.s32 %s22, %s29
      %p167 = scmp.eq.s32.totalorder %s166, 0
      %s169 = sadd.s32 %s168, 1
      %s170 = scalar_select %p167, %s168, %s169
      %p173 = pneg %p167
      %p174 = scmp.eq.s32.totalorder %s22, 1
      %p175 = por %p173, %p174
      %p176 = scmp.ne.s32.totalorder %s168, %s171
      %p177 = scmp.eq.s32.totalorder %s22, 0
      %p178 = por %p176, %p177
      %p179 = scmp.ne.s32.totalorder %s168, %s171
      %p180 = scmp.eq.s32.totalorder %s27, 1
      %p181 = por %p179, %p180
      %p182 = scmp.ne.s32.totalorder %s171, %s172
      %p183 = scmp.eq.s32.totalorder %s27, 0
      %p184 = por %p182, %p183
      %p185 = scmp.ne.s32.totalorder %s171, %s172
      %p186 = scmp.eq.s32.totalorder %s28, 1
      %p187 = por %p185, %p186
      %p189 = scmp.ne.s32.totalorder %s172, %s188
      %p190 = scmp.eq.s32.totalorder %s28, 0
      %p191 = por %p189, %p190
      %p192 = scmp.le.s32.totalorder 1, %s22
      %p193 = scmp.lt.s32.totalorder %s22, 3
      %p194 = pnand %p192, %p193
      %p195 = pneg %p194
      // Predicated region
      $region9: #{tpu_custom_call.1} parent=5 // pred_check
        _
      $region10: #{tpu_custom_call.1} parent=5 // pred_check_branch
        %197 = sbr.rel (%p194) target = $region12
      $region11: #{tpu_custom_call.1} parent=5 // pred_region
        %s198 = ssub.s32 %s22, 1
        // Predicated region
        $region13: #{tpu_custom_call.1} parent=11 // pred_check
          %p199 = pneg %p95
        $region14: #{tpu_custom_call.1} parent=11 // pred_check_branch
          %201 = sbr.rel (%p199) target = $region16
        $region15: #{tpu_custom_call.1} parent=11 // pred_region
          %s203 = ssub.s32 256, 256
          %204 = vsyncadd [#allocation6], %s203
          %s205 = sshll.u32 [#allocation7], 4
          %s206 = int_to_ptr.vmem [resolvable:$true] %s205
          %211 = dma.hbm_to_vmem [thread:$0]  %s2, 256, %s206, [#allocation6], 64, 64, 4
        $region16: #{tpu_custom_call.1} parent=11 // pred_fallthru
          _
        // Predicated region
        $region17: #{tpu_custom_call.1} parent=11 // pred_check
          %p212 = pneg %p116
        $region18: #{tpu_custom_call.1} parent=11 // pred_check_branch
          %214 = sbr.rel (%p212) target = $region20
        $region19: #{tpu_custom_call.1} parent=11 // pred_region
          %s216 = ssub.s32 128, 128
          %217 = vsyncadd [#allocation9], %s216
          %s218 = sshll.u32 [#allocation8], 4
          %s219 = int_to_ptr.vmem [resolvable:$true] %s218
          %224 = dma.hbm_to_vmem [thread:$0]  %s3, 128, %s219, [#allocation9], 64, 64, 4
        $region20: #{tpu_custom_call.1} parent=11 // pred_fallthru
          _
        // Predicated region
        $region21: #{tpu_custom_call.1} parent=11 // pred_check
          %p225 = pneg %p137
        $region22: #{tpu_custom_call.1} parent=11 // pred_check_branch
          %227 = sbr.rel (%p225) target = $region24
        $region23: #{tpu_custom_call.1} parent=11 // pred_region
          _
        $region24: #{tpu_custom_call.1} parent=11 // pred_fallthru
          _
        // Predicated region
        $region25: #{tpu_custom_call.1} parent=11 // pred_check
          %p228 = pneg %p158
        $region26: #{tpu_custom_call.1} parent=11 // pred_check_branch
          %230 = sbr.rel (%p228) target = $region28
        $region27: #{tpu_custom_call.1} parent=11 // pred_region
          _
        $region28: #{tpu_custom_call.1} parent=11 // pred_fallthru
          _
      $region12: #{tpu_custom_call.1} parent=5 // pred_fallthru
        _
      %p231 = scmp.lt.s32.totalorder %s22, 2
      // Predicated region
      $region29: #{tpu_custom_call.1} parent=5 // pred_check
        %p232 = pneg %p231
      $region30: #{tpu_custom_call.1} parent=5 // pred_check_branch
        %234 = sbr.rel (%p232) target = $region32
      $region31: #{tpu_custom_call.1} parent=5 // pred_region
        // Predicated region
        $region33: #{tpu_custom_call.1} parent=31 // pred_check
          %p235 = pneg %p42
        $region34: #{tpu_custom_call.1} parent=31 // pred_check_branch
          %237 = sbr.rel (%p235) target = $region36
        $region35: #{tpu_custom_call.1} parent=31 // pred_region
          %s238 = sand.u32 %s32, 1
          %s239 = scalar_lea.sflag [#allocation3], %s238
          %s240 = sand.u32 %s32, 1
          %s241 = smul.addr %s240, 8
          %s242 = scalar_lea.vmem [#allocation2], %s241
          %s244 = ssub.s32 128, 128
          %245 = vsyncadd %s239, %s244
          %s246 = smul.addr %s22, 128
          %s247 = scalar_lea.hbm %s0, %s246
          %s249 = sshll.u32 %s242, 4
          %s250 = int_to_ptr.vmem [resolvable:$true] %s249
          %252 = dma.hbm_to_vmem [thread:$0]  %s247, 128, %s250, %s239
        $region36: #{tpu_custom_call.1} parent=31 // pred_fallthru
          _
        // Predicated region
        $region37: #{tpu_custom_call.1} parent=31 // pred_check
          %p253 = pneg %p68
        $region38: #{tpu_custom_call.1} parent=31 // pred_check_branch
          %255 = sbr.rel (%p253) target = $region40
        $region39: #{tpu_custom_call.1} parent=31 // pred_region
          %s256 = sand.u32 %s22, 1
          %s257 = scalar_lea.sflag [#allocation6], %s256
          %s258 = sand.u32 %s58, 1
          %s259 = smul.addr %s258, 8
          %s260 = scalar_lea.vmem [#allocation5], %s259
          %s262 = ssub.s32 128, 128
          %263 = vsyncadd %s257, %s262
          %s264 = smul.addr %s22, 128
          %s265 = scalar_lea.hbm %s1, %s264
          %s267 = sshll.u32 %s260, 4
          %s268 = int_to_ptr.vmem [resolvable:$true] %s267
          %270 = dma.hbm_to_vmem [thread:$0]  %s265, 128, %s268, %s257
        $region40: #{tpu_custom_call.1} parent=31 // pred_fallthru
          _
      $region32: #{tpu_custom_call.1} parent=5 // pred_fallthru
        _
      %p271 = scmp.le.s32.totalorder 1, %s22
      %p272 = scmp.lt.s32.totalorder %s22, 3
      %p273 = pnand %p271, %p272
      %p274 = pneg %p273
      // Predicated region
      $region41: #{tpu_custom_call.1} parent=5 // pred_check
        _
      $region42: #{tpu_custom_call.1} parent=5 // pred_check_branch
        %276 = sbr.rel (%p273) target = $region44
      $region43: #{tpu_custom_call.1} parent=5 // pred_region
        %s277 = ssub.s32 %s22, 1
        %s278 = sand.u32 %s35, 1
        %s279 = scalar_lea.sflag [#allocation3], %s278
        %s280 = sand.u32 %s35, 1
        %s281 = smul.addr %s280, 8
        %s282 = scalar_lea.vmem [#allocation2], %s281
        // Predicated region
        $region45: #{tpu_custom_call.1} parent=43 // pred_check
          %p283 = pneg %p48
        $region46: #{tpu_custom_call.1} parent=43 // pred_check_branch
          %285 = sbr.rel (%p283) target = $region48
        $region47: #{tpu_custom_call.1} parent=43 // pred_region
          %286 = dma.done %s279, 128
        $region48: #{tpu_custom_call.1} parent=43 // pred_fallthru
          _
        %s287 = sand.u32 %s27, 1
        %s288 = scalar_lea.sflag [#allocation6], %s287
        %s289 = sand.u32 %s61, 1
        %s290 = smul.addr %s289, 8
        %s291 = scalar_lea.vmem [#allocation5], %s290
        // Predicated region
        $region49: #{tpu_custom_call.1} parent=43 // pred_check
          %p292 = pneg %p74
        $region50: #{tpu_custom_call.1} parent=43 // pred_check_branch
          %294 = sbr.rel (%p292) target = $region52
        $region51: #{tpu_custom_call.1} parent=43 // pred_region
          %295 = dma.done %s288, 128
        $region52: #{tpu_custom_call.1} parent=43 // pred_fallthru
          _
        // Predicated region
        $region53: #{tpu_custom_call.1} parent=43 // pred_check
          %p296 = pneg %p95
        $region54: #{tpu_custom_call.1} parent=43 // pred_check_branch
          %298 = sbr.rel (%p296) target = $region56
        $region55: #{tpu_custom_call.1} parent=43 // pred_region
          %299 = dma.done [#allocation6], 256
        $region56: #{tpu_custom_call.1} parent=43 // pred_fallthru
          _
        // Predicated region
        $region57: #{tpu_custom_call.1} parent=43 // pred_check
          %p300 = pneg %p116
        $region58: #{tpu_custom_call.1} parent=43 // pred_check_branch
          %302 = sbr.rel (%p300) target = $region60
        $region59: #{tpu_custom_call.1} parent=43 // pred_region
          %303 = dma.done [#allocation9], 128
        $region60: #{tpu_custom_call.1} parent=43 // pred_fallthru
          _
        %s304 = sand.u32 %s35, 1
        %s305 = scalar_lea.sflag [#allocation3], %s304
        %s306 = sand.u32 %s35, 1
        %s307 = smul.addr %s306, 8
        %s308 = scalar_lea.vmem [#allocation2], %s307
        %p309 = pneg %p48
        %p310 = pneg %p45
        %s311 = sand.u32 %s27, 1
        %s312 = scalar_lea.sflag [#allocation6], %s311
        %s313 = sand.u32 %s61, 1
        %s314 = smul.addr %s313, 8
        %s315 = scalar_lea.vmem [#allocation5], %s314
        %p316 = pneg %p74
        %p317 = pneg %p71
        %p318 = pneg %p95
        %p319 = pneg %p92
        %p320 = pneg %p116
        %p321 = pneg %p113
        %p322 = pneg %p137
        %p323 = pneg %p134
        %p324 = pneg %p158
        %p325 = pneg %p155
        %p326 = pneg %p184
        %p327 = pneg %p181
        %s328 = sand.u32 %s171, 1
        %s329 = scalar_lea.sflag [#allocation4], %s328
        %s330 = sand.u32 %s171, 1
        %s331 = smul.addr %s330, 8
        %s332 = scalar_lea.vmem [#allocation10], %s331
        %v334 = vld [vmem:[%s282] sm:$0xff]
        %v335 = vpack.c.bf16 %v334, %v334
        %v336 = vld [vmem:[#allocation7] sm:$0xf]
        %v337 = vld [vmem:[#allocation7 + $0x4] sm:$0xf]
        %v338 = vld [vmem:[#allocation7 + $0x8] sm:$0xf]
        %v339 = vld [vmem:[#allocation7 + $0xc] sm:$0xf]
        %v340 = vld [vmem:[%s4] sm:$0x1]
        %v341 = vld [vmem:[%s5] sm:$0x1]
        %v343 = vlaneseq
        %v344 = vshrl.u32 %v343, 7
        %v345 = vsub.s32 0, %v344
        %v346 = vrot.slane %v340, %v345
        %v352 = vunpack.c.l.b16 %v336
        %v353 = vunpack.c.l.b16 %v337
        %v354 = vunpack.c.l.b16 %v338
        %v355 = vunpack.c.l.b16 %v339
        %v356 = vpack.c.b16 %v353, %v352
        %v357 = vpack.c.b16 %v355, %v354
        %vm360 = vcmask 261120
        %v362 = vsel %vm360, %v335, 0
        %364 = vmatprep.subr.bf16.mxu0 0
        %365 = vmatpush1.bf16.msra.mxu0 0
        %366 = vmatprep.subr.bf16.mxu0 0
        %367 = vmatpush1.bf16.msra.mxu0 0
        %368 = vmatprep.subr.bf16.mxu0 0
        %369 = vmatpush1.bf16.msra.mxu0 0
        %370 = vmatprep.subr.bf16.mxu0 0
        %371 = vmatpush1.bf16.msra.mxu0 0
        %372 = vmatprep.subr.bf16.mxu0 0
        %373 = vmatpush1.bf16.msra.mxu0 0
        %374 = vmatprep.subr.bf16.mxu0 0
        %375 = vmatpush1.bf16.msra.mxu0 0
        %376 = vmatprep.subr.bf16.mxu0 0
        %377 = vmatpush1.bf16.msra.mxu0 %v357
        %378 = vmatprep.subr.bf16.mxu0 0
        %379 = vmatpush1.bf16.msra.mxu0 %v356
        %380 = vmatprep.subr.bf16.mxu0 0
        %381 = vmatpush2.bf16.msra.mxu0 0
        %382 = vmatprep.subr.bf16.mxu0 0
        %383 = vmatpush2.bf16.msra.mxu0 0
        %384 = vmatprep.subr.bf16.mxu0 0
        %385 = vmatpush2.bf16.msra.mxu0 0
        %386 = vmatprep.subr.bf16.mxu0 0
        %387 = vmatpush2.bf16.msra.mxu0 0
        %388 = vmatprep.subr.bf16.mxu0 0
        %389 = vmatpush2.bf16.msra.mxu0 0
        %390 = vmatprep.subr.bf16.mxu0 0
        %391 = vmatpush2.bf16.msra.mxu0 0
        %392 = vmatprep.subr.bf16.mxu0 0
        %393 = vmatpush2.bf16.msra.mxu0 0
        %394 = vmatprep.subr.bf16.mxu0 0
        %395 = vmatpush2.bf16.msra.mxu0 0
        %396 = vmatprep.mubr.bf16.mxu0 0
        %397 = vmatmul.mubr.bf16.gmra.mxu0 %v362
        %v398 = vpop.f32.mrf.mxu0
        %v399 = vadd.f32 %v346, %v398
        %v400 = vpop.f32.mrf.mxu0
        %v401 = vpop.f32.mrf.mxu0
        %v402 = vpop.f32.mrf.mxu0
        %403 = vdwg.mxu0
        %v405 = vlaneseq
        %v406 = vshrl.u32 %v405, 7
        %v407 = vsub.s32 0, %v406
        %v408 = vrot.slane %v341, %v407
        %v410 = vmul.f32 %v399, %v408
        %vm411 = vcmask 523264
        %412 = vst.msk [vmem:[%s332] sm:$0xff] %vm411, %v410
        %v413 = vld [vmem:[%s291] sm:$0xff]
        %v414 = vpack.c.bf16 %v413, %v413
        %v415 = vld [vmem:[#allocation8] sm:$0xf]
        %v416 = vld [vmem:[#allocation8 + $0x4] sm:$0xf]
        %v417 = vld [vmem:[%s4] sm:$0x1]
        %v418 = vld [vmem:[%s5] sm:$0x1]
        %v420 = vlaneseq
        %v421 = vshrl.u32 %v420, 7
        %v422 = vsub.s32 0, %v421
        %v423 = vrot.slane %v417, %v422
        %v426 = vunpack.c.l.b16 %v415
        %v427 = vunpack.c.l.b16 %v416
        %v428 = vpack.c.b16 %v427, %v426
        %430 = vrot.lane.b32.xlu0 %v423, 64
        %v431 = vpop.permute.xlu0 %430
        %vm433 = vcmask 130048
        %v435 = vsel %vm433, %v414, 0
        %437 = vmatprep.subr.bf16.mxu0 0
        %438 = vmatpush1.bf16.msra.mxu0 0
        %439 = vmatprep.subr.bf16.mxu0 0
        %440 = vmatpush1.bf16.msra.mxu0 0
        %441 = vmatprep.subr.bf16.mxu0 0
        %442 = vmatpush1.bf16.msra.mxu0 0
        %443 = vmatprep.subr.bf16.mxu0 0
        %444 = vmatpush1.bf16.msra.mxu0 0
        %445 = vmatprep.subr.bf16.mxu0 0
        %446 = vmatpush1.bf16.msra.mxu0 0
        %447 = vmatprep.subr.bf16.mxu0 0
        %448 = vmatpush1.bf16.msra.mxu0 0
        %449 = vmatprep.subr.bf16.mxu0 0
        %450 = vmatpush1.bf16.msra.mxu0 0
        %451 = vmatprep.subr.bf16.mxu0 0
        %452 = vmatpush1.bf16.msra.mxu0 %v428
        %453 = vmatprep.subr.bf16.mxu0 0
        %454 = vmatpush2.bf16.msra.mxu0 0
        %455 = vmatprep.subr.bf16.mxu0 0
        %456 = vmatpush2.bf16.msra.mxu0 0
        %457 = vmatprep.subr.bf16.mxu0 0
        %458 = vmatpush2.bf16.msra.mxu0 0
        %459 = vmatprep.subr.bf16.mxu0 0
        %460 = vmatpush2.bf16.msra.mxu0 0
        %461 = vmatprep.subr.bf16.mxu0 0
        %462 = vmatpush2.bf16.msra.mxu0 0
        %463 = vmatprep.subr.bf16.mxu0 0
        %464 = vmatpush2.bf16.msra.mxu0 0
        %465 = vmatprep.subr.bf16.mxu0 0
        %466 = vmatpush2.bf16.msra.mxu0 0
        %467 = vmatprep.subr.bf16.mxu0 0
        %468 = vmatpush2.bf16.msra.mxu0 0
        %469 = vmatprep.mubr.bf16.mxu0 0
        %470 = vmatmul.mubr.bf16.gmra.mxu0 %v435
        %v471 = vpop.f32.mrf.mxu0
        %v472 = vadd.f32 %v431, %v471
        %v473 = vpop.f32.mrf.mxu0
        %v474 = vpop.f32.mrf.mxu0
        %v475 = vpop.f32.mrf.mxu0
        %476 = vdwg.mxu0
        %v478 = vlaneseq
        %v479 = vshrl.u32 %v478, 7
        %v480 = vsub.s32 0, %v479
        %v481 = vrot.slane %v418, %v480
        %482 = vrot.lane.b32.xlu0 %v481, 64
        %v483 = vpop.permute.xlu0 %482
        %v485 = vmul.f32 %v472, %v483
        %487 = vrot.lane.b32.xlu0 %v485, 64
        %v488 = vpop.permute.xlu0 %487
        %vm490 = vcmask 1048064
        %491 = vst.msk [vmem:[%s332] sm:$0xff] %vm490, %v488
        %s492 = sand.u32 %s171, 1
        %s493 = scalar_lea.sflag [#allocation4], %s492
        %s494 = sand.u32 %s171, 1
        %s495 = smul.addr %s494, 8
        %s496 = scalar_lea.vmem [#allocation10], %s495
        // Predicated region
        $region61: #{tpu_custom_call.1} parent=43 // pred_check
          %p497 = pneg %p181
        $region62: #{tpu_custom_call.1} parent=43 // pred_check_branch
          %499 = sbr.rel (%p497) target = $region64
        $region63: #{tpu_custom_call.1} parent=43 // pred_region
          %s501 = ssub.s32 128, 128
          %502 = vsyncadd %s493, %s501
          %s503 = smul.addr %s27, 128
          %s504 = scalar_lea.hbm %s6, %s503
          %s506 = sshll.u32 %s496, 4
          %s507 = int_to_ptr.vmem [resolvable:$true] %s506
          %509 = dma.vmem_to_hbm [thread:$0]  %s507, 128, %s504, %s493
        $region64: #{tpu_custom_call.1} parent=43 // pred_fallthru
          _
      $region44: #{tpu_custom_call.1} parent=5 // pred_fallthru
        _
      %p510 = scmp.le.s32.totalorder 2, %s22
      // Predicated region
      $region65: #{tpu_custom_call.1} parent=5 // pred_check
        %p511 = pneg %p510
      $region66: #{tpu_custom_call.1} parent=5 // pred_check_branch
        %513 = sbr.rel (%p511) target = $region68
      $region67: #{tpu_custom_call.1} parent=5 // pred_region
        %s514 = ssub.s32 %s22, 2
        // Predicated region
        $region69: #{tpu_custom_call.1} parent=67 // pred_check
          %p515 = pneg %p187
        $region70: #{tpu_custom_call.1} parent=67 // pred_check_branch
          %517 = sbr.rel (%p515) target = $region72
        $region71: #{tpu_custom_call.1} parent=67 // pred_region
          %s518 = sand.u32 %s172, 1
          %s519 = scalar_lea.sflag [#allocation4], %s518
          %s520 = sand.u32 %s172, 1
          %s521 = smul.addr %s520, 8
          %s522 = scalar_lea.vmem [#allocation10], %s521
          %523 = dma.done %s519, 128
        $region72: #{tpu_custom_call.1} parent=67 // pred_fallthru
          _
      $region68: #{tpu_custom_call.1} parent=5 // pred_fallthru
        _
    $region6: #{tpu_custom_call.1} parent=1 // loop_footer
      %s26 = sadd.s32 1, %s22
    $region7: #{tpu_custom_call.1} parent=1 // loop_footer_branch
      %21 = sbr.rel target = $region3
    $region8: #{tpu_custom_call.1} parent=1 // loop_exit
      _
    %524 = vsyncpa [#allocation3], 1
    %s525 = scalar_lea.sflag [#allocation3], 1
    %526 = vsyncpa %s525, 1
    %527 = vsyncpa [#allocation6], 1
    %s528 = scalar_lea.sflag [#allocation6], 1
    %529 = vsyncpa %s528, 1
    %530 = vsyncpa [#allocation9], 1
    %531 = vsyncpa [#allocation4], 1
    %s532 = scalar_lea.sflag [#allocation4], 1
    %533 = vsyncpa %s532, 1

</llo_original>
